<compile_context>
chip_gen: v7x
topology: tpu7x:2x2x1
jax: 0.10.0
libtpu: 0.0.40
codegen_flags: <defaults>
</compile_context>

<pallas_src>
import functools

import jax
import jax.numpy as jnp
from jax.experimental import pallas as pl
from jax.experimental.pallas import tpu as pltpu


_LANE = 128          # lane width / MXU contraction width
_TILE_EDGES = 512    # edges per grid step (one lane-dense (1, 512) output row per tile)
_GROUP = 8           # gathered rows packed per aligned (8, Hp) scratch store
_ROW_BLOCK = 512     # stage-1 node rows per grid step


def _pick_vmem_limit():
    """~75% of physical VMEM: ~48 MiB on v7x (64 MiB/TC), ~96 MiB on v5e/v6e (128 MiB)."""
    try:
        cap = int(pltpu.get_tpu_info().vmem_capacity_bytes)
        return max(32 * 1024 * 1024, min(cap * 3 // 4, 112 * 1024 * 1024))
    except Exception:
        return 48 * 1024 * 1024


# ---------------------------------------------------------------------------
# Stage 1: zm = z @ M^T   (rows = nodes; computed once, row-tiled over N)
# ---------------------------------------------------------------------------
def _apply_basis_kernel(z_ref, m_ref, zm_ref):
    zm_ref[...] = jax.lax.dot_general(
        z_ref[...], m_ref[...],
        dimension_numbers=(((1,), (1,)), ((), ())),      # z @ M^T
        preferred_element_type=jnp.float32).astype(zm_ref.dtype)


def _apply_basis(z_pad, m_pad, row_block, vmem_limit):
    Np, Hp = z_pad.shape
    return pl.pallas_call(
        _apply_basis_kernel,
        out_shape=jax.ShapeDtypeStruct((Np, Hp), z_pad.dtype),
        grid=(Np // row_block,),
        in_specs=[pl.BlockSpec((row_block, Hp), lambda i: (i, 0)),
                  pl.BlockSpec((Hp, Hp), lambda i: (0, 0))],       # M resident (tiny)
        out_specs=pl.BlockSpec((row_block, Hp), lambda i: (i, 0)),
        compiler_params=pltpu.CompilerParams(
            dimension_semantics=("parallel",),
            vmem_limit_bytes=vmem_limit),
    )(z_pad, m_pad)


# ---------------------------------------------------------------------------
# Stage 2: per edge tile -- index-driven gather + product + MXU row-sum + sigmoid
# ---------------------------------------------------------------------------
def _edge_kernel(eidx_ref,            # (2, TE) int32, SMEM (pipelined per-tile block)
                 z_ref, zm_ref,       # (Np, Hp) node tables, VMEM resident
                 o_ref,               # (1, TE) f32 lane-dense output block
                 gprod_ref,           # (TE, Hp) f32 scratch: gathered src*zm products
                 *, apply_sigmoid: bool, tile_edges: int):
    Hp = z_ref.shape[-1]
    n_groups = tile_edges // _GROUP
    # Hoisted once (JAX does not CSE broadcast_in_dim inside the loop).
    row_iota = jax.lax.broadcasted_iota(jnp.int32, (_GROUP, Hp), 0)

    def gather_group(g, carry):
        base = pl.multiple_of(g * _GROUP, _GROUP)
        src_tile = jnp.zeros((_GROUP, Hp), jnp.float32)
        dst_tile = jnp.zeros((_GROUP, Hp), jnp.float32)
        # 8 index-driven row gathers packed into one (8, Hp) register tile via
        # sublane-insert selects (VALU), so each group needs a single aligned
        # unmasked store instead of 8 masked (1, Hp) stores (vst-slot bound on v5e).
        for j in range(_GROUP):
            src = eidx_ref[0, base + j]
            dst = eidx_ref[1, base + j]
            zrow = z_ref[pl.ds(src, 1), :].astype(jnp.float32)   # (1, Hp)
            mrow = zm_ref[pl.ds(dst, 1), :].astype(jnp.float32)  # (1, Hp)
            sel = row_iota == j
            src_tile = jnp.where(sel, zrow, src_tile)
            dst_tile = jnp.where(sel, mrow, dst_tile)
        # Product folded into the gather loop (VPU slack) -> one store per 8 edges.
        gprod_ref[pl.ds(base, _GROUP), :] = src_tile * dst_tile
        return carry

    jax.lax.fori_loop(0, n_groups, gather_group, 0)

    # Row-wise sum folded into an MXU dot -> result is already a lane-dense (1, TE) row.
    ones = jnp.ones((1, Hp), jnp.float32)
    x = jax.lax.dot_general(ones, gprod_ref[...],
                            dimension_numbers=(((1,), (1,)), ((), ())),
                            preferred_element_type=jnp.float32)       # (1, TE)
    if apply_sigmoid:
        x = jax.nn.sigmoid(x)
    o_ref[...] = x.astype(o_ref.dtype)


def _edge_call(eidx, z_tab, zm_tab, *, tile_edges, apply_sigmoid, vmem_limit,
               single_buffer_tables):
    Np, Hp = z_tab.shape
    e_pad = eidx.shape[1]
    n_tiles = e_pad // tile_edges

    table_kwargs = {}
    if single_buffer_tables:
        # Constant index map => the block never changes; one buffer is enough.
        table_kwargs = dict(pipeline_mode=pl.Buffered(1))
    table_spec = pl.BlockSpec((Np, Hp), lambda t: (0, 0), **table_kwargs)

    return pl.pallas_call(
        functools.partial(_edge_kernel, apply_sigmoid=apply_sigmoid,
                          tile_edges=tile_edges),
        out_shape=jax.ShapeDtypeStruct((1, e_pad), jnp.float32),
        grid=(n_tiles,),
        in_specs=[
            # Per-tile edge ids as a regular pipelined SMEM block (bounded SMEM use).
            pl.BlockSpec((2, tile_edges), lambda t: (0, t),
                         memory_space=pltpu.MemorySpace.SMEM),
            table_spec,     # resident z
            table_spec,     # resident zm
        ],
        out_specs=pl.BlockSpec((1, tile_edges), lambda t: (0, t)),
        scratch_shapes=[pltpu.VMEM((tile_edges, Hp), jnp.float32)],
        compiler_params=pltpu.CompilerParams(
            dimension_semantics=("parallel",),          # edge tiles across both TCs (v7x)
            vmem_limit_bytes=vmem_limit),
    )(eidx, z_tab, zm_tab)


def inner_product_decoder_basis(z, edge_index, inner_prod_matrix, sigmoid=True,
                                tile_edges=_TILE_EDGES, table_dtype=jnp.float32):
    """z: (N, H); edge_index: (2, E) int; inner_prod_matrix: (H, H). Returns (E,) f32.

    table_dtype=jnp.bfloat16 halves node-table VMEM / gather traffic (recommended on
    v6e/v7x); the reduction still accumulates in f32 on the MXU.
    """
    assert tile_edges % max(_GROUP, _LANE) == 0
    N, H = z.shape
    E = edge_index.shape[1]
    Hp = pl.cdiv(H, _LANE) * _LANE

    # Pad node count to a multiple of 8 (sublane); if large, to the stage-1 row block.
    Np = pl.cdiv(N, 8) * 8
    if Np >= _ROW_BLOCK:
        Np = pl.cdiv(Np, _ROW_BLOCK) * _ROW_BLOCK
        row_block = _ROW_BLOCK
    else:
        row_block = Np

    vmem_limit = _pick_vmem_limit()

    # Zero-pad hidden dim to the full 128-lane / MXU width and node rows (exact).
    z_pad = jnp.zeros((Np, Hp), table_dtype).at[:N, :H].set(z.astype(table_dtype))
    m_pad = jnp.zeros((Hp, Hp), table_dtype).at[:H, :H].set(
        inner_prod_matrix.astype(table_dtype))

    # Stage 1: zm = z @ M^T, computed once (not per edge tile), row-tiled over nodes.
    zm_pad = _apply_basis(z_pad, m_pad, row_block, vmem_limit)

    # Edge ids: keep the (2, E) layout, pad E up to a multiple of the edge tile.
    # NOTE: the clamp silently remaps out-of-range node ids to valid rows (the PyTorch
    # reference would error instead); kept to guarantee in-bounds VMEM reads.
    n_tiles = pl.cdiv(E, tile_edges)
    e_pad = n_tiles * tile_edges
    eidx = jnp.clip(edge_index.astype(jnp.int32), 0, N - 1)
    eidx = jnp.zeros((2, e_pad), jnp.int32).at[:, :E].set(eidx)

    try:
        out = _edge_call(eidx, z_pad, zm_pad, tile_edges=tile_edges,
                         apply_sigmoid=sigmoid, vmem_limit=vmem_limit,
                         single_buffer_tables=True)
    except Exception:
        # pipeline_mode=pl.Buffered(1) unsupported on this jax version: fall back to
        # default (double-buffered) resident tables.
        out = _edge_call(eidx, z_pad, zm_pad, tile_edges=tile_edges,
                         apply_sigmoid=sigmoid, vmem_limit=vmem_limit,
                         single_buffer_tables=False)
    return out[0, :E]


def _reference(z, edge_index, inner_prod_matrix, sigmoid=True):
    z1 = z[edge_index[0]]
    z2 = (inner_prod_matrix @ z[edge_index[1]].T).T
    x = jnp.sum(z1 * z2, axis=1)
    return jax.nn.sigmoid(x) if sigmoid else x


if __name__ == "__main__":
    N, H, E = 16, 32, 200     # nodes, hidden_channels, edges

    key = jax.random.PRNGKey(0)
    k_basis, k_z, k_e = jax.random.split(key, 3)

    basis = jax.random.normal(k_basis, (H, H), jnp.float32)
    inner_prod_matrix = basis.T @ basis                       # as in the module __init__
    z = 0.2 * jax.random.normal(k_z, (N, H), jnp.float32)     # keep logits in active range
    edge_index = jax.random.randint(k_e, (2, E), 0, N, jnp.int32)

    out = inner_product_decoder_basis(z, edge_index, inner_prod_matrix, sigmoid=True)
    out = jax.block_until_ready(out)
    ref = _reference(z, edge_index, inner_prod_matrix, sigmoid=True)
    assert out.shape == (E,)
    assert jnp.allclose(out, ref, atol=2e-4, rtol=1e-3), (out, ref)

    out_logits = inner_product_decoder_basis(z, edge_index, inner_prod_matrix, sigmoid=False)
    out_logits = jax.block_until_ready(out_logits)
    ref_logits = _reference(z, edge_index, inner_prod_matrix, sigmoid=False)
    assert jnp.allclose(out_logits, ref_logits, atol=1e-3, rtol=1e-3), (out_logits, ref_logits)

    print("KERNEL_OK")
</pallas_src>

<mosaic_0001>
module attributes {stable_mosaic.version = 11 : i64} {
  func.func @_apply_basis_kernel(%arg0: i32, %arg1: memref<16x128xf32, #tpu.memory_space<vmem>>, %arg2: memref<128x128xf32, #tpu.memory_space<vmem>>, %arg3: memref<16x128xf32, #tpu.memory_space<vmem>>) attributes {dimension_semantics = [#tpu.dimension_semantics<parallel>], iteration_bounds = array<i64: 1>, scalar_prefetch = 0 : i64, scratch_operands = 0 : i64, tpu.core_type = #tpu.core_type<tc>, window_params = [{transform_indices = @transform_0, window_bounds = array<i64: 16, 128>}, {pipeline_mode = #tpu.pipeline_mode<synchronous>, transform_indices = @transform_1, window_bounds = array<i64: 128, 128>}, {transform_indices = @transform_2, window_bounds = array<i64: 16, 128>}]} {
    %c0 = arith.constant 0 : index
    %c0_0 = arith.constant 0 : index
    %0 = vector.load %arg1[%c0, %c0_0] : memref<16x128xf32, #tpu.memory_space<vmem>>, vector<16x128xf32>
    %c0_1 = arith.constant 0 : index
    %c0_2 = arith.constant 0 : index
    %1 = vector.load %arg2[%c0_1, %c0_2] : memref<128x128xf32, #tpu.memory_space<vmem>>, vector<128x128xf32>
    %cst = arith.constant dense<0.000000e+00> : vector<16x128xf32>
    %2 = tpu.matmul %0, %1, %cst {dimension_numbers = #tpu.dot_dimension_numbers<[1], [1], [0], [0], [0, 0, 1, 0], [], []>} : vector<16x128xf32>, vector<128x128xf32>, vector<16x128xf32> -> vector<16x128xf32>
    %c0_3 = arith.constant 0 : index
    %c0_4 = arith.constant 0 : index
    %3 = vector.load %arg3[%c0_3, %c0_4] : memref<16x128xf32, #tpu.memory_space<vmem>>, vector<16x128xf32>
    tpu.vector_store %arg3[%c0_3, %c0_4], %2 {strides = array<i32>} : memref<16x128xf32, #tpu.memory_space<vmem>>, vector<16x128xf32>,
    return
  }
  func.func @transform_0(%arg0: i32) -> (i32, i32) {
    %c0_i32 = arith.constant 0 : i32
    %c0_i32_0 = arith.constant 0 : i32
    return %arg0, %c0_i32 : i32, i32
  }
  func.func @transform_1(%arg0: i32) -> (i32, i32) {
    %c0_i32 = arith.constant 0 : i32
    %c0_i32_0 = arith.constant 0 : i32
    %c0_i32_1 = arith.constant 0 : i32
    return %c0_i32, %c0_i32_0 : i32, i32
  }
  func.func @transform_2(%arg0: i32) -> (i32, i32) {
    %c0_i32 = arith.constant 0 : i32
    %c0_i32_0 = arith.constant 0 : i32
    return %arg0, %c0_i32 : i32, i32
  }
}

</mosaic_0001>

<llo_original>
// kernel: tpu_custom_call.1
$region0: #{tpu_custom_call.1}
  #allocation0 [shape = 'u32[]', space=smem, size = 0x4, offset = 0x4, fixed_abs, tag = 'smem constant byte address 0x4 - core index']
  #allocation1 [shape = 'u32[144,128]{1,0:T(1,128)}', space=vmem, size = 0x12000, scoped, tag = 'internal scratch']
  %s0 = inlined_call_operand.hbm [shape: f32[16,128], index: 0, kind: input, shape index: {}]
  %s1 = inlined_call_operand.hbm [shape: f32[128,128], index: 1, kind: input, shape index: {}]
  %s2 = inlined_call_operand.hbm [shape: f32[16,128], index: 2, kind: output, shape index: {}]
  %s3 = sld [smem:[#allocation0]]
  $region26: #{tpu_custom_call.1} parent=0
    _
  %s5 = ssub.s32 1, %s3
  %s6 = scalar_select 0, %s5, %s3
  $region1: #{tpu_custom_call.1} parent=0
    #allocation2 [shape = 'u8[8192]{0}', space=vmem, size = 0x2000, scoped, tag = 'input window, operand 0, single buffered']
    #allocation3 [shape = 's32[1]{0}', space=sflag, size = 0x4, scoped, tag = 'scoped memory for tpu_custom_call.1']
    #allocation4 [shape = 's32[1]{0}', space=sflag, size = 0x4, scoped, tag = 'scoped memory for tpu_custom_call.1']
    #allocation5 [shape = 'u8[65536]{0}', space=vmem, size = 0x10000, scoped, tag = 'input window, operand 1, single buffered']
    #allocation6 [shape = 's32[1]{0}', space=sflag, size = 0x4, scoped, tag = 'scoped memory for tpu_custom_call.1']
    #allocation7 [shape = 'u8[8192]{0}', space=vmem, size = 0x2000, scoped, tag = 'output window, operand 0, single buffered']
    %7 = vsyncpa [#allocation3], 0
    %8 = vsyncpa [#allocation6], 0
    %9 = vsyncpa [#allocation4], 0
    // Predicated region
    $region2: #{tpu_custom_call.1} parent=1 // pred_check
      _
    $region3: #{tpu_custom_call.1} parent=1 // pred_check_branch
      %11 = sbr.rel (0) target = $region5
    $region4: #{tpu_custom_call.1} parent=1 // pred_region
      %s13 = ssub.s32 256, 256
      %14 = vsyncadd [#allocation3], %s13
      %s15 = sshll.u32 [#allocation2], 4
      %s16 = int_to_ptr.vmem [resolvable:$true] %s15
      %21 = dma.hbm_to_vmem [thread:$0]  %s0, 256, %s16, [#allocation3], 128, 128, 8
    $region5: #{tpu_custom_call.1} parent=1 // pred_fallthru
      _
    // Predicated region
    $region6: #{tpu_custom_call.1} parent=1 // pred_check
      _
    $region7: #{tpu_custom_call.1} parent=1 // pred_check_branch
      %23 = sbr.rel (0) target = $region9
    $region8: #{tpu_custom_call.1} parent=1 // pred_region
      %s25 = ssub.s32 2048, 2048
      %26 = vsyncadd [#allocation6], %s25
      %s27 = sshll.u32 [#allocation5], 4
      %s28 = int_to_ptr.vmem [resolvable:$true] %s27
      %33 = dma.hbm_to_vmem [thread:$0]  %s1, 2048, %s28, [#allocation6], 128, 128, 8
    $region9: #{tpu_custom_call.1} parent=1 // pred_fallthru
      _
    // Predicated region
    $region10: #{tpu_custom_call.1} parent=1 // pred_check
      _
    $region11: #{tpu_custom_call.1} parent=1 // pred_check_branch
      %35 = sbr.rel (0) target = $region13
    $region12: #{tpu_custom_call.1} parent=1 // pred_region
      %36 = dma.done [#allocation3], 256
    $region13: #{tpu_custom_call.1} parent=1 // pred_fallthru
      _
    // Predicated region
    $region14: #{tpu_custom_call.1} parent=1 // pred_check
      _
    $region15: #{tpu_custom_call.1} parent=1 // pred_check_branch
      %38 = sbr.rel (0) target = $region17
    $region16: #{tpu_custom_call.1} parent=1 // pred_region
      %39 = dma.done [#allocation6], 2048
    $region17: #{tpu_custom_call.1} parent=1 // pred_fallthru
      _
    %v40 = vld [vmem:[#allocation2] sm:$0xff]
    %v41 = vld [vmem:[#allocation2 + $0x8] sm:$0xff]
    %v42 = vld [vmem:[#allocation5] sm:$0xff]
    %v43 = vld [vmem:[#allocation5 + $0x8] sm:$0xff]
    %v44 = vld [vmem:[#allocation5 + $0x10] sm:$0xff]
    %v45 = vld [vmem:[#allocation5 + $0x18] sm:$0xff]
    %v46 = vld [vmem:[#allocation5 + $0x20] sm:$0xff]
    %v47 = vld [vmem:[#allocation5 + $0x28] sm:$0xff]
    %v48 = vld [vmem:[#allocation5 + $0x30] sm:$0xff]
    %v49 = vld [vmem:[#allocation5 + $0x38] sm:$0xff]
    %v50 = vld [vmem:[#allocation5 + $0x40] sm:$0xff]
    %v51 = vld [vmem:[#allocation5 + $0x48] sm:$0xff]
    %v52 = vld [vmem:[#allocation5 + $0x50] sm:$0xff]
    %v53 = vld [vmem:[#allocation5 + $0x58] sm:$0xff]
    %v54 = vld [vmem:[#allocation5 + $0x60] sm:$0xff]
    %v55 = vld [vmem:[#allocation5 + $0x68] sm:$0xff]
    %v56 = vld [vmem:[#allocation5 + $0x70] sm:$0xff]
    %v57 = vld [vmem:[#allocation5 + $0x78] sm:$0xff]
    %58 = vmatprep.subr.mxu0 0.0
    %59 = vmatpush1.xpose.msra.mxu0 %v42
    %60 = vmatprep.subr.mxu0 0.0
    %61 = vmatpush1.xpose.msra.mxu0 %v43
    %62 = vmatprep.subr.mxu0 0.0
    %63 = vmatpush1.xpose.msra.mxu0 %v44
    %64 = vmatprep.subr.mxu0 0.0
    %65 = vmatpush1.xpose.msra.mxu0 %v45
    %66 = vmatprep.subr.mxu0 0.0
    %67 = vmatpush1.xpose.msra.mxu0 %v46
    %68 = vmatprep.subr.mxu0 0.0
    %69 = vmatpush1.xpose.msra.mxu0 %v47
    %70 = vmatprep.subr.mxu0 0.0
    %71 = vmatpush1.xpose.msra.mxu0 %v48
    %72 = vmatprep.subr.mxu0 0.0
    %73 = vmatpush1.xpose.msra.mxu0 %v49
    %74 = vmatprep.subr.mxu0 0.0
    %75 = vmatpush1.xpose.msra.mxu0 %v50
    %76 = vmatprep.subr.mxu0 0.0
    %77 = vmatpush1.xpose.msra.mxu0 %v51
    %78 = vmatprep.subr.mxu0 0.0
    %79 = vmatpush1.xpose.msra.mxu0 %v52
    %80 = vmatprep.subr.mxu0 0.0
    %81 = vmatpush1.xpose.msra.mxu0 %v53
    %82 = vmatprep.subr.mxu0 0.0
    %83 = vmatpush1.xpose.msra.mxu0 %v54
    %84 = vmatprep.subr.mxu0 0.0
    %85 = vmatpush1.xpose.msra.mxu0 %v55
    %86 = vmatprep.subr.mxu0 0.0
    %87 = vmatpush1.xpose.msra.mxu0 %v56
    %88 = vmatprep.subr.mxu0 0.0
    %89 = vmatpush1.xpose.msra.mxu0 %v57
    %90 = vmatprep.subr.mxu0 0.0
    %91 = vmatpush1.xpose.msra.mxu0 0.0
    %92 = vmatprep.subr.mxu0 0.0
    %93 = vmatpush1.xpose.msra.mxu0 0.0
    %94 = vmatprep.subr.mxu0 0.0
    %95 = vmatpush1.xpose.msra.mxu0 0.0
    %96 = vmatprep.subr.mxu0 0.0
    %97 = vmatpush1.xpose.msra.mxu0 0.0
    %98 = vmatprep.subr.mxu0 0.0
    %99 = vmatpush1.xpose.msra.mxu0 0.0
    %100 = vmatprep.subr.mxu0 0.0
    %101 = vmatpush1.xpose.msra.mxu0 0.0
    %102 = vmatprep.subr.mxu0 0.0
    %103 = vmatpush1.xpose.msra.mxu0 0.0
    %104 = vmatprep.subr.mxu0 0.0
    %105 = vmatpush1.xpose.msra.mxu0 0.0
    %106 = vmatprep.subr.mxu0 0.0
    %107 = vmatpush1.xpose.msra.mxu0 0.0
    %108 = vmatprep.subr.mxu0 0.0
    %109 = vmatpush1.xpose.msra.mxu0 0.0
    %110 = vmatprep.subr.mxu0 0.0
    %111 = vmatpush1.xpose.msra.mxu0 0.0
    %112 = vmatprep.subr.mxu0 0.0
    %113 = vmatpush1.xpose.msra.mxu0 0.0
    %114 = vmatprep.subr.mxu0 0.0
    %115 = vmatpush1.xpose.msra.mxu0 0.0
    %116 = vmatprep.subr.mxu0 0.0
    %117 = vmatpush1.xpose.msra.mxu0 0.0
    %118 = vmatprep.subr.mxu0 0.0
    %119 = vmatpush1.xpose.msra.mxu0 0.0
    %120 = vmatprep.subr.mxu0 0.0
    %121 = vmatpush1.xpose.msra.mxu0 0.0
    %122 = vmatprep.mubr.f32.mxu0 0.0
    %123 = vmatmul.mubr.f32.gmra.mrb[0].mxu0 %v40
    %v124 = vpop.f32.mrb[0].mxu0
    %v125 = vadd.f32 0.0, %v124
    %v126 = vpop.f32.mrb[0].mxu0
    %127 = vmatprep.mubr.f32.mxu0 0.0
    %128 = vmatmul.mubr.f32.gmra.mrb[0].mxu0 %v41
    %v129 = vpop.f32.mrb[0].mxu0
    %v130 = vadd.f32 0.0, %v129
    %v131 = vpop.f32.mrb[0].mxu0
    %132 = vdwg.mxu0
    %133 = vst [vmem:[#allocation7] sm:$0xff] %v125
    %134 = vst [vmem:[#allocation7 + $0x8] sm:$0xff] %v130
    // Predicated region
    $region18: #{tpu_custom_call.1} parent=1 // pred_check
      _
    $region19: #{tpu_custom_call.1} parent=1 // pred_check_branch
      %136 = sbr.rel (0) target = $region21
    $region20: #{tpu_custom_call.1} parent=1 // pred_region
      %s138 = ssub.s32 256, 256
      %139 = vsyncadd [#allocation4], %s138
      %s140 = sshll.u32 [#allocation7], 4
      %s141 = int_to_ptr.vmem [resolvable:$true] %s140
      %146 = dma.vmem_to_hbm [thread:$0]  %s141, 256, %s2, [#allocation4], 128, 128, 8
    $region21: #{tpu_custom_call.1} parent=1 // pred_fallthru
      _
    // Predicated region
    $region22: #{tpu_custom_call.1} parent=1 // pred_check
      _
    $region23: #{tpu_custom_call.1} parent=1 // pred_check_branch
      %148 = sbr.rel (0) target = $region25
    $region24: #{tpu_custom_call.1} parent=1 // pred_region
      %149 = dma.done [#allocation4], 256
    $region25: #{tpu_custom_call.1} parent=1 // pred_fallthru
      _
    %150 = vsyncpa [#allocation3], 1
    %151 = vsyncpa [#allocation6], 1
    %152 = vsyncpa [#allocation4], 1

</llo_original>
